<compile_context>
chip_gen: v5e
topology: v5e:2x2
jax: 0.10.0
libtpu: 0.0.40
codegen_flags: <defaults>
</compile_context>

<pallas_src>
import jax
import jax.numpy as jnp
from jax import lax
from jax.experimental import pallas as pl
from jax.experimental.pallas import tpu as pltpu


def _embed_dropout_kernel(ids_ref, seed_ref, row_ref, out_ref):
    # ids_ref : SMEM (N,)  int32   -- scalar prefetch; consumed by the index_maps
    # seed_ref: SMEM (1,)  int32   -- dropout seed
    # row_ref : VMEM (1, 1, D) f32 -- the gathered embedding row for token i
    # out_ref : VMEM (1, 1, D) f32
    i = pl.program_id(0)
    d = out_ref.shape[-1]
    row = row_ref[...]                                   # (1, 1, D)

    # Counter-based hash -> one keep/drop decision per (token, feature).
    # Uses the GLOBAL element index, so the mask is independent of tiling and
    # differs across grid steps while staying deterministic for a given seed.
    col = lax.broadcasted_iota(jnp.int32, row.shape, 2)  # (1, 1, D)
    x = (i * d + col).astype(jnp.uint32)                 # global element index
    x = x * jnp.uint32(0x9E3779B1)
    x = x ^ (seed_ref[0].astype(jnp.uint32) * jnp.uint32(0x85EBCA77))
    x = x ^ (x >> 16)
    x = x * jnp.uint32(0x85EBCA6B)
    x = x ^ (x >> 13)
    x = x * jnp.uint32(0xC2B2AE35)
    x = x ^ (x >> 16)

    keep = (x >> 31) == jnp.uint32(0)                    # P(keep) = 0.5
    # Fold the 1/(1-p) = 2.0 scale into the mask: single select + single mul.
    scale = jnp.where(keep, jnp.float32(2.0), jnp.float32(0.0))
    out_ref[...] = (row * scale).astype(out_ref.dtype)


def embeddings_forward(token_ids, table, seed):
    """token_ids: (B, S) integer array. table: (classes, d_model) float32.

    Returns (B, S, d_model) = Dropout(0.5)(Embedding(table)[token_ids]),
    training-mode dropout semantics. d_model should ideally be a multiple of
    128 for lane-dense stores (the demo uses 128).
    """
    b, s = token_ids.shape
    c, d = table.shape
    n = b * s

    # Clamp defensively: a data-dependent index_map has no OOB runtime check.
    ids = jnp.clip(token_ids.reshape(n).astype(jnp.int32), 0, c - 1)
    seed_arr = jnp.asarray([seed], dtype=jnp.int32)
    # Present table / output as (*, 1, d): trailing block dims == trailing
    # array dims, so the per-row gather blocks are tiling-rule safe.
    table3 = table.reshape(c, 1, d)

    grid_spec = pltpu.PrefetchScalarGridSpec(
        num_scalar_prefetch=2,          # (ids, seed) land in SMEM
        grid=(n,),                      # one token per grid step
        in_specs=[
            # Gather: block row index comes straight from the token id.
            pl.BlockSpec((1, 1, d), lambda i, ids_ref, seed_ref: (ids_ref[i], 0, 0)),
        ],
        out_specs=pl.BlockSpec((1, 1, d), lambda i, ids_ref, seed_ref: (i, 0, 0)),
    )

    out = pl.pallas_call(
        _embed_dropout_kernel,
        grid_spec=grid_spec,
        out_shape=jax.ShapeDtypeStruct((n, 1, d), table.dtype),
        compiler_params=pltpu.CompilerParams(
            dimension_semantics=("parallel",),       # v7x dual-TC sharding
            vmem_limit_bytes=32 * 1024 * 1024,       # tiny blocks; plenty of headroom
        ),
        cost_estimate=pl.CostEstimate(
            flops=0,
            transcendentals=0,
            bytes_accessed=2 * n * d * 4 + n * 4,    # gathered rows + output + ids
        ),
    )(ids, seed_arr, table3)

    return out.reshape(b, s, d)


def init_embedding_table(key, classes, d_model):
    # nn.Embedding default init: N(0, 1); padding_idx=0 row forced to zero.
    w = jax.random.normal(key, (classes, d_model), dtype=jnp.float32)
    return w.at[0].set(0.0)


if __name__ == "__main__":
    d_model = 128          # multiple of 128 -> lane-dense output stores
    classes = 16
    batch, seq = 2, 8

    key = jax.random.PRNGKey(0)
    k_tab, k_ids = jax.random.split(key)

    table = init_embedding_table(k_tab, classes, d_model)
    token_ids = jax.random.randint(k_ids, (batch, seq), 0, classes, dtype=jnp.int32)

    out = embeddings_forward(token_ids, table, seed=1234)
    out = jax.block_until_ready(out)

    assert out.shape == (batch, seq, d_model), out.shape
    assert out.dtype == jnp.float32

    # Gather correctness: every kept element equals exactly 2 * table[id, :].
    ref = jnp.take(table, token_ids, axis=0)             # (B, S, D)
    err = jnp.where(out != 0.0, jnp.abs(out - 2.0 * ref), 0.0)
    assert bool(jnp.all(err <= 1e-6))

    # padding_idx=0 rows stay exactly zero (row 0 of the table is zero; dropout
    # of zero is zero).
    pad_rows = out[token_ids == 0]
    assert pad_rows.size == 0 or bool(jnp.all(pad_rows == 0.0))

    print("KERNEL_OK")
</pallas_src>

<mosaic_0001>
module attributes {stable_mosaic.version = 11 : i64} {
  func.func @_embed_dropout_kernel(%arg0: i32, %arg1: memref<16xi32, #tpu.memory_space<smem>>, %arg2: memref<1xi32, #tpu.memory_space<smem>>, %arg3: memref<1x1x128xf32, #tpu.memory_space<vmem>>, %arg4: memref<1x1x128xf32, #tpu.memory_space<vmem>>) attributes {dimension_semantics = [#tpu.dimension_semantics<parallel>], iteration_bounds = array<i64: 16>, scalar_prefetch = 2 : i64, scratch_operands = 0 : i64, tpu.core_type = #tpu.core_type<tc>, window_params = [{transform_indices = @transform_0, window_bounds = array<i64: 1, 1, 128>}, {transform_indices = @transform_1, window_bounds = array<i64: 1, 1, 128>}]} {
    %c0 = arith.constant 0 : index
    %c0_0 = arith.constant 0 : index
    %c0_1 = arith.constant 0 : index
    %0 = vector.load %arg3[%c0, %c0_0, %c0_1] : memref<1x1x128xf32, #tpu.memory_space<vmem>>, vector<1x1x128xf32>
    %1 = tpu.iota {dimensions = array<i32: 2>} : vector<1x1x128xi32>
    %c128_i32 = arith.constant 128 : i32
    %2 = arith.muli %arg0, %c128_i32 : i32
    %3 = vector.broadcast %2 : i32 to vector<1x1x128xi32>
    %4 = arith.addi %3, %1 : vector<1x1x128xi32>
    %c-1640531535_i32 = arith.constant -1640531535 : i32
    %5 = vector.broadcast %c-1640531535_i32 : i32 to vector<1x1x128xi32>
    %6 = arith.muli %4, %5 : vector<1x1x128xi32>
    %c0_2 = arith.constant 0 : index
    %7 = memref.load %arg2[%c0_2] : memref<1xi32, #tpu.memory_space<smem>>
    %c-2048144777_i32 = arith.constant -2048144777 : i32
    %8 = arith.muli %7, %c-2048144777_i32 : i32
    %9 = vector.broadcast %8 : i32 to vector<1x1x128xi32>
    %10 = arith.xori %6, %9 : vector<1x1x128xi32>
    %c16_i32 = arith.constant 16 : i32
    %11 = vector.broadcast %c16_i32 : i32 to vector<1x1x128xi32>
    %12 = arith.shrui %10, %11 : vector<1x1x128xi32>
    %13 = arith.xori %10, %12 : vector<1x1x128xi32>
    %c-2048144789_i32 = arith.constant -2048144789 : i32
    %14 = vector.broadcast %c-2048144789_i32 : i32 to vector<1x1x128xi32>
    %15 = arith.muli %13, %14 : vector<1x1x128xi32>
    %c13_i32 = arith.constant 13 : i32
    %16 = vector.broadcast %c13_i32 : i32 to vector<1x1x128xi32>
    %17 = arith.shrui %15, %16 : vector<1x1x128xi32>
    %18 = arith.xori %15, %17 : vector<1x1x128xi32>
    %c-1028477387_i32 = arith.constant -1028477387 : i32
    %19 = vector.broadcast %c-1028477387_i32 : i32 to vector<1x1x128xi32>
    %20 = arith.muli %18, %19 : vector<1x1x128xi32>
    %c16_i32_3 = arith.constant 16 : i32
    %21 = vector.broadcast %c16_i32_3 : i32 to vector<1x1x128xi32>
    %22 = arith.shrui %20, %21 : vector<1x1x128xi32>
    %23 = arith.xori %20, %22 : vector<1x1x128xi32>
    %c31_i32 = arith.constant 31 : i32
    %24 = vector.broadcast %c31_i32 : i32 to vector<1x1x128xi32>
    %25 = arith.shrui %23, %24 : vector<1x1x128xi32>
    %c0_i32 = arith.constant 0 : i32
    %26 = vector.broadcast %c0_i32 : i32 to vector<1x1x128xi32>
    %27 = arith.cmpi eq, %25, %26 : vector<1x1x128xi32>
    %cst = arith.constant 2.000000e+00 : f32
    %cst_4 = arith.constant 0.000000e+00 : f32
    %28 = vector.broadcast %cst : f32 to vector<1x1x128xf32>
    %29 = vector.broadcast %cst_4 : f32 to vector<1x1x128xf32>
    %30 = arith.select %27, %28, %29 : vector<1x1x128xi1>, vector<1x1x128xf32>
    %31 = arith.mulf %0, %30 : vector<1x1x128xf32>
    %c0_5 = arith.constant 0 : index
    %c0_6 = arith.constant 0 : index
    %c0_7 = arith.constant 0 : index
    %32 = vector.load %arg4[%c0_5, %c0_6, %c0_7] : memref<1x1x128xf32, #tpu.memory_space<vmem>>, vector<1x1x128xf32>
    tpu.vector_store %arg4[%c0_5, %c0_6, %c0_7], %31 {strides = array<i32>} : memref<1x1x128xf32, #tpu.memory_space<vmem>>, vector<1x1x128xf32>,
    return
  }
  func.func @transform_0(%arg0: i32, %arg1: memref<16xi32, #tpu.memory_space<smem>>, %arg2: memref<1xi32, #tpu.memory_space<smem>>) -> (i32, i32, i32) {
    %0 = arith.index_cast %arg0 : i32 to index
    %1 = memref.load %arg1[%0] : memref<16xi32, #tpu.memory_space<smem>>
    %c0_i32 = arith.constant 0 : i32
    %c0_i32_0 = arith.constant 0 : i32
    %c0_i32_1 = arith.constant 0 : i32
    return %1, %c0_i32, %c0_i32_0 : i32, i32, i32
  }
  func.func @transform_1(%arg0: i32, %arg1: memref<16xi32, #tpu.memory_space<smem>>, %arg2: memref<1xi32, #tpu.memory_space<smem>>) -> (i32, i32, i32) {
    %c0_i32 = arith.constant 0 : i32
    %c0_i32_0 = arith.constant 0 : i32
    %c0_i32_1 = arith.constant 0 : i32
    return %arg0, %c0_i32, %c0_i32_0 : i32, i32, i32
  }
}

</mosaic_0001>

<llo_original>
// kernel: tpu_custom_call.1
$region0: #{tpu_custom_call.1}
  #allocation0 [shape = 'u32[]', space=smem, size = 0x4, offset = 0x4, fixed_abs, tag = 'smem constant byte address 0x4 - core index']
  #allocation1 [shape = 'u32[72,128]{1,0:T(1,128)}', space=vmem, size = 0x9000, scoped, tag = 'internal scratch']
  #allocation2 [shape = 's32[1]{0}', space=sflag, size = 0x4, scoped, tag = 'scoped memory for tpu_custom_call.1']
  #allocation3 [shape = 'u8[512]{0}', space=smem, size = 0x200, scoped, tag = 'prefetched SMEM operand 0']
  #allocation4 [shape = 's32[1]{0:T(128)S(6)}', space=smem, size = 0x200, scoped, tag = 'prefetched SMEM operand 1']
  %s0 = inlined_call_operand.vmem [shape: s32[16], index: 0, kind: input, shape index: {}]
  %s1 = inlined_call_operand.<no memory space> [shape: s32[1], index: 1, kind: input, shape index: {}]
  %s2 = inlined_call_operand.hbm [shape: f32[16,1,128], index: 2, kind: input, shape index: {}]
  %s3 = inlined_call_operand.hbm [shape: f32[16,1,128], index: 3, kind: output, shape index: {}]
  %s4 = sld [smem:[#allocation0]]
  $region41: #{tpu_custom_call.1} parent=0
    _
  %s6 = ssub.s32 1, %s4
  %s7 = scalar_select 0, %s6, %s4
  %s9 = sshll.u32 %s0, 4
  %s10 = int_to_ptr.vmem [resolvable:$true] %s9
  %12 = dma.vmem_to_smem %s10, 16, [#allocation3], [#allocation2]
  %13 = sst [smem:[#allocation4]] %s1
  %15 = dma.done [#allocation2], 16
  %16 = sfence
  $region1: #{tpu_custom_call.1} parent=0
    #allocation5 [shape = 'u8[1024]{0}', space=vmem, size = 0x400, scoped, tag = 'input window, operand 2']
    #allocation6 [shape = 's32[2]{0}', space=sflag, size = 0x8, scoped, tag = 'scoped memory for tpu_custom_call.1']
    #allocation7 [shape = 's32[2]{0}', space=sflag, size = 0x8, scoped, tag = 'scoped memory for tpu_custom_call.1']
    #allocation8 [shape = 'u8[1024]{0}', space=vmem, size = 0x400, scoped, tag = 'output window, operand 0']
    %17 = vsyncpa [#allocation6], 0
    %s18 = scalar_lea.sflag [#allocation6], 1
    %19 = vsyncpa %s18, 0
    %20 = vsyncpa [#allocation7], 0
    %s21 = scalar_lea.sflag [#allocation7], 1
    %22 = vsyncpa %s21, 0
    loop: start=0, step=1, limit=18
    $region2: #{tpu_custom_call.1} parent=1 // loop_pre_header
      _
    $region3: #{tpu_custom_call.1} parent=1 // loop_header
      %s24 = sphi 0, %s28
      %p25 = scmp.ge.s32.totalorder %s24, 18
      %s36 = sphi 0, %s38
      %s39 = sphi 0, %s36
      %s40 = sphi 0, %s39
      %s56 = sphi 0, %s40
      %s62 = sphi 0, %s64
      %s65 = sphi 0, %s62
      %s66 = sphi 0, %s65
      %s82 = sphi 0, %s66
    $region4: #{tpu_custom_call.1} parent=1 // loop_header_branch
      %27 = sbr.rel (%p25) target = $region8
    $region5: #{tpu_custom_call.1} parent=1 // loop_body
      %s29 = ssub.s32 %s24, 1
      %s30 = ssub.s32 %s24, 2
      %s31 = sadd.s32 %s24, 1
      %s32 = sld [smem:[#allocation3 + %s24]]
      %s33 = sld [smem:[#allocation3 + %s31]]
      %s34 = ssub.s32 %s32, %s33
      %p35 = scmp.eq.s32.totalorder %s34, 0
      %s37 = sadd.s32 %s36, 1
      %s38 = scalar_select %p35, %s36, %s37
      %p41 = pneg %p35
      %p42 = scmp.eq.s32.totalorder %s24, 15
      %p43 = por %p41, %p42
      %p44 = scmp.ne.s32.totalorder %s36, %s39
      %p45 = scmp.eq.s32.totalorder %s24, 0
      %p46 = por %p44, %p45
      %p47 = scmp.ne.s32.totalorder %s36, %s39
      %p48 = scmp.eq.s32.totalorder %s29, 15
      %p49 = por %p47, %p48
      %p50 = scmp.ne.s32.totalorder %s39, %s40
      %p51 = scmp.eq.s32.totalorder %s29, 0
      %p52 = por %p50, %p51
      %p53 = scmp.ne.s32.totalorder %s39, %s40
      %p54 = scmp.eq.s32.totalorder %s30, 15
      %p55 = por %p53, %p54
      %p57 = scmp.ne.s32.totalorder %s40, %s56
      %p58 = scmp.eq.s32.totalorder %s30, 0
      %p59 = por %p57, %p58
      %s60 = ssub.s32 %s24, %s31
      %p61 = scmp.eq.s32.totalorder %s60, 0
      %s63 = sadd.s32 %s62, 1
      %s64 = scalar_select %p61, %s62, %s63
      %p67 = pneg %p61
      %p68 = scmp.eq.s32.totalorder %s24, 15
      %p69 = por %p67, %p68
      %p70 = scmp.ne.s32.totalorder %s62, %s65
      %p71 = scmp.eq.s32.totalorder %s24, 0
      %p72 = por %p70, %p71
      %p73 = scmp.ne.s32.totalorder %s62, %s65
      %p74 = scmp.eq.s32.totalorder %s29, 15
      %p75 = por %p73, %p74
      %p76 = scmp.ne.s32.totalorder %s65, %s66
      %p77 = scmp.eq.s32.totalorder %s29, 0
      %p78 = por %p76, %p77
      %p79 = scmp.ne.s32.totalorder %s65, %s66
      %p80 = scmp.eq.s32.totalorder %s30, 15
      %p81 = por %p79, %p80
      %p83 = scmp.ne.s32.totalorder %s66, %s82
      %p84 = scmp.eq.s32.totalorder %s30, 0
      %p85 = por %p83, %p84
      %p86 = scmp.le.s32.totalorder 1, %s24
      %p87 = scmp.lt.s32.totalorder %s24, 17
      %p88 = pnand %p86, %p87
      %p89 = pneg %p88
      // Predicated region
      $region9: #{tpu_custom_call.1} parent=5 // pred_check
        _
      $region10: #{tpu_custom_call.1} parent=5 // pred_check_branch
        %91 = sbr.rel (%p88) target = $region12
      $region11: #{tpu_custom_call.1} parent=5 // pred_region
        %s92 = ssub.s32 %s24, 1
      $region12: #{tpu_custom_call.1} parent=5 // pred_fallthru
        _
      %p93 = scmp.lt.s32.totalorder %s24, 16
      // Predicated region
      $region13: #{tpu_custom_call.1} parent=5 // pred_check
        %p94 = pneg %p93
      $region14: #{tpu_custom_call.1} parent=5 // pred_check_branch
        %96 = sbr.rel (%p94) target = $region16
      $region15: #{tpu_custom_call.1} parent=5 // pred_region
        // Predicated region
        $region17: #{tpu_custom_call.1} parent=15 // pred_check
          %p97 = pneg %p46
        $region18: #{tpu_custom_call.1} parent=15 // pred_check_branch
          %99 = sbr.rel (%p97) target = $region20
        $region19: #{tpu_custom_call.1} parent=15 // pred_region
          %s100 = sand.u32 %s36, 1
          %s101 = scalar_lea.sflag [#allocation6], %s100
          %s102 = sand.u32 %s36, 1
          %s103 = scalar_lea.vmem [#allocation5], %s102
          %s104 = sld [smem:[#allocation3 + %s24]]
          %106 = vsyncadd %s101, 0
          %s107 = scalar_lea.hbm %s2, %s104
          %s109 = sshll.u32 %s107, 4
          %s110 = int_to_ptr.hbm [resolvable:$true] %s109
          %s111 = sshll.u32 %s103, 4
          %s112 = int_to_ptr.vmem [resolvable:$true] %s111
          %114 = dma.hbm_to_vmem [thread:$0]  %s110, 16, %s112, %s101
        $region20: #{tpu_custom_call.1} parent=15 // pred_fallthru
          _
      $region16: #{tpu_custom_call.1} parent=5 // pred_fallthru
        _
      %p115 = scmp.le.s32.totalorder 1, %s24
      %p116 = scmp.lt.s32.totalorder %s24, 17
      %p117 = pnand %p115, %p116
      %p118 = pneg %p117
      // Predicated region
      $region21: #{tpu_custom_call.1} parent=5 // pred_check
        _
      $region22: #{tpu_custom_call.1} parent=5 // pred_check_branch
        %120 = sbr.rel (%p117) target = $region24
      $region23: #{tpu_custom_call.1} parent=5 // pred_region
        %s121 = ssub.s32 %s24, 1
        %s122 = sand.u32 %s39, 1
        %s123 = scalar_lea.sflag [#allocation6], %s122
        %s124 = sand.u32 %s39, 1
        %s125 = scalar_lea.vmem [#allocation5], %s124
        // Predicated region
        $region25: #{tpu_custom_call.1} parent=23 // pred_check
          %p126 = pneg %p52
        $region26: #{tpu_custom_call.1} parent=23 // pred_check_branch
          %128 = sbr.rel (%p126) target = $region28
        $region27: #{tpu_custom_call.1} parent=23 // pred_region
          %130 = dma.done %s123, 16
        $region28: #{tpu_custom_call.1} parent=23 // pred_fallthru
          _
        %s131 = sand.u32 %s39, 1
        %s132 = scalar_lea.sflag [#allocation6], %s131
        %s133 = sand.u32 %s39, 1
        %s134 = scalar_lea.vmem [#allocation5], %s133
        %p135 = pneg %p52
        %p136 = pneg %p49
        %p137 = pneg %p78
        %p138 = pneg %p75
        %s139 = sand.u32 %s65, 1
        %s140 = scalar_lea.sflag [#allocation7], %s139
        %s141 = sand.u32 %s65, 1
        %s142 = scalar_lea.vmem [#allocation8], %s141
        %s143 = sld [smem:[#allocation3 + %s29]]
        %v144 = vld [vmem:[%s125] sm:$0x1]
        %v145 = vlaneseq
        %v146 = vand.u32 %v145, 127
        %s147 = smul.u32 %s29, 128
        %v148 = vstv %s147
        %v149 = vadd.s32 %v148, %v146
        %v150 = vmul.u32 %v149, 2654435761
        %s151 = sld [smem:[#allocation4]]
        %s152 = smul.u32 %s151, 2246822519
        %v153 = vstv %s152
        %v154 = vxor.u32 %v150, %v153
        %v155 = vshrl.u32 %v154, 16
        %v156 = vxor.u32 %v154, %v155
        %v157 = vmul.u32 %v156, 2246822507
        %v158 = vshrl.u32 %v157, 13
        %v159 = vxor.u32 %v157, %v158
        %v160 = vmul.u32 %v159, 3266489909
        %v161 = vshrl.u32 %v160, 16
        %v162 = vxor.u32 %v160, %v161
        %v163 = vshrl.u32 %v162, 31
        %vm164 = vcmp.eq.s32.totalorder %v163, 0
        %v165 = vsel %vm164, 2.0, 0.0
        %v166 = vmul.f32 %v144, %v165
        %167 = vst [vmem:[%s142] sm:$0x1] %v166
        %s168 = sand.u32 %s65, 1
        %s169 = scalar_lea.sflag [#allocation7], %s168
        %s170 = sand.u32 %s65, 1
        %s171 = scalar_lea.vmem [#allocation8], %s170
        // Predicated region
        $region29: #{tpu_custom_call.1} parent=23 // pred_check
          %p172 = pneg %p75
        $region30: #{tpu_custom_call.1} parent=23 // pred_check_branch
          %174 = sbr.rel (%p172) target = $region32
        $region31: #{tpu_custom_call.1} parent=23 // pred_region
          %176 = vsyncadd %s169, 0
          %s177 = scalar_lea.hbm %s3, %s29
          %s179 = sshll.u32 %s171, 4
          %s180 = int_to_ptr.vmem [resolvable:$true] %s179
          %s181 = sshll.u32 %s177, 4
          %s182 = int_to_ptr.hbm [resolvable:$true] %s181
          %184 = dma.vmem_to_hbm [thread:$0]  %s180, 16, %s182, %s169
        $region32: #{tpu_custom_call.1} parent=23 // pred_fallthru
          _
      $region24: #{tpu_custom_call.1} parent=5 // pred_fallthru
        _
      %p185 = scmp.le.s32.totalorder 2, %s24
      // Predicated region
      $region33: #{tpu_custom_call.1} parent=5 // pred_check
        %p186 = pneg %p185
      $region34: #{tpu_custom_call.1} parent=5 // pred_check_branch
        %188 = sbr.rel (%p186) target = $region36
      $region35: #{tpu_custom_call.1} parent=5 // pred_region
        %s189 = ssub.s32 %s24, 2
        // Predicated region
        $region37: #{tpu_custom_call.1} parent=35 // pred_check
          %p190 = pneg %p81
        $region38: #{tpu_custom_call.1} parent=35 // pred_check_branch
          %192 = sbr.rel (%p190) target = $region40
        $region39: #{tpu_custom_call.1} parent=35 // pred_region
          %s193 = sand.u32 %s66, 1
          %s194 = scalar_lea.sflag [#allocation7], %s193
          %s195 = sand.u32 %s66, 1
          %s196 = scalar_lea.vmem [#allocation8], %s195
          %198 = dma.done %s194, 16
        $region40: #{tpu_custom_call.1} parent=35 // pred_fallthru
          _
      $region36: #{tpu_custom_call.1} parent=5 // pred_fallthru
        _
    $region6: #{tpu_custom_call.1} parent=1 // loop_footer
      %s28 = sadd.s32 1, %s24
    $region7: #{tpu_custom_call.1} parent=1 // loop_footer_branch
      %23 = sbr.rel target = $region3
    $region8: #{tpu_custom_call.1} parent=1 // loop_exit
      _
    %199 = vsyncpa [#allocation6], 1
    %s200 = scalar_lea.sflag [#allocation6], 1
    %201 = vsyncpa %s200, 1
    %202 = vsyncpa [#allocation7], 1
    %s203 = scalar_lea.sflag [#allocation7], 1
    %204 = vsyncpa %s203, 1

</llo_original>
